<compile_context>
chip_gen: v6e
topology: v6e:2x2x1
jax: 0.10.0
libtpu: 0.0.40
codegen_flags: <defaults>
</compile_context>

<pallas_src>
import functools

import jax
import jax.numpy as jnp
from jax import lax
from jax.experimental import pallas as pl
from jax.experimental.pallas import tpu as pltpu

EPS = 1e-5  # nn.BatchNorm2d default eps


def _resblock_kernel(x_ref, we1_ref, sc1_ref, sh1_ref, we2_ref, sc2_ref, sh2_ref,
                     p_ref, out_ref, xrows_ref, h1rows_ref, *, N, H, W, Cin, C1, C2):
    """Whole batch in one invocation. Activations live as (N*H, W*C) lane-dense
    rows; each conv is 3 row-band matmuls against expanded weights."""
    M = N * H

    # ---- stage input rows with a 1-row zero border (top/bottom only; the
    #      horizontal pad=1 is folded into zeros of the expanded weights) ----
    zx = jnp.zeros((N, 1, W * Cin), jnp.float32)
    xrows_ref[:, pl.ds(0, 1), :] = zx
    xrows_ref[:, pl.ds(H + 1, 1), :] = zx
    xrows_ref[:, pl.ds(1, H), :] = x_ref[...]

    # ---- conv1 (+ folded bias/BN, ReLU): 3 row-band MXU matmuls ----
    acc1 = jnp.zeros((M, W * C1), jnp.float32)
    for dy in range(3):
        lhs = xrows_ref[:, pl.ds(dy, H), :].reshape(M, W * Cin)
        acc1 = acc1 + jnp.dot(lhs, we1_ref[dy], preferred_element_type=jnp.float32)
    h1 = jnp.maximum(acc1 * sc1_ref[...] + sh1_ref[...], 0.0)        # (M, W*C1)
    # TODO(synk): Dropout(0.1) is stochastic; modeled as eval-mode identity.

    # ---- stage conv1 output rows with a 1-row zero border for conv2 ----
    zh = jnp.zeros((N, 1, W * C1), jnp.float32)
    h1rows_ref[:, pl.ds(0, 1), :] = zh
    h1rows_ref[:, pl.ds(H + 1, 1), :] = zh
    h1rows_ref[:, pl.ds(1, H), :] = h1.reshape(N, H, W * C1)

    # ---- conv2 (+ folded bias/BN, ReLU) ----
    acc2 = jnp.zeros((M, W * C2), jnp.float32)
    for dy in range(3):
        lhs = h1rows_ref[:, pl.ds(dy, H), :].reshape(M, W * C1)
        acc2 = acc2 + jnp.dot(lhs, we2_ref[dy], preferred_element_type=jnp.float32)
    z = jnp.maximum(acc2 * sc2_ref[...] + sh2_ref[...], 0.0)          # (M, W*C2)

    # ---- residual: x channel-padded at the FRONT to C2 channels, realized as a
    #      0/1 lane-projection matmul so the epilogue stays on 128-lane rows ----
    resid = jnp.dot(x_ref[...].reshape(M, W * Cin), p_ref[...],
                    preferred_element_type=jnp.float32)
    out_ref[...] = (z + resid).reshape(N, H, W * C2)                  # lane-dense store


def my_res_block_forward(x_nchw, folded_params):
    (we1, sc1, sh1), (we2, sc2, sh2) = folded_params
    N, Cin, H, W = x_nchw.shape
    C1 = we1.shape[2] // W
    C2 = we2.shape[2] // W

    # NHWC, then flatten (W, C) onto the lane axis -> fully lane-dense kernel I/O.
    x_rows = jnp.transpose(x_nchw, (0, 2, 3, 1)).astype(jnp.float32).reshape(N, H, W * Cin)
    p = residual_projection(Cin, C2, W)

    kernel = functools.partial(_resblock_kernel, N=N, H=H, W=W, Cin=Cin, C1=C1, C2=C2)

    def full(shape):
        return pl.BlockSpec(shape, lambda i, _s=shape: (0,) * len(_s))

    out_dense = pl.pallas_call(
        kernel,
        out_shape=jax.ShapeDtypeStruct((N, H, W * C2), jnp.float32),
        grid_spec=pltpu.PrefetchScalarGridSpec(
            num_scalar_prefetch=0,
            grid=(1,),
            in_specs=[
                full((N, H, W * Cin)),            # x rows, lane-dense
                full((3, W * Cin, W * C1)),       # expanded conv1 weights (per dy)
                full((1, W * C1)),                # folded BN1 scale (tiled over w)
                full((1, W * C1)),                # folded BN1 shift
                full((3, W * C1, W * C2)),        # expanded conv2 weights (per dy)
                full((1, W * C2)),                # folded BN2 scale
                full((1, W * C2)),                # folded BN2 shift
                full((W * Cin, W * C2)),          # residual channel-front-pad projection
            ],
            out_specs=full((N, H, W * C2)),
            scratch_shapes=[
                pltpu.VMEM((N, H + 2, W * Cin), jnp.float32),   # x rows + zero border
                pltpu.VMEM((N, H + 2, W * C1), jnp.float32),    # h1 rows + zero border
            ],
        ),
        compiler_params=pltpu.CompilerParams(dimension_semantics=("parallel",)),
    )(x_rows, we1, sc1, sh1, we2, sc2, sh2, p)

    return jnp.transpose(out_dense.reshape(N, H, W, C2), (0, 3, 1, 2))  # back to NCHW


# ---------------- parameter setup (deterministic, in-script) ----------------

def init_raw_params(key, chanels, pool_every, filters):
    """Mimics the module's __init__ loop; shapes follow nn.Conv2d / nn.BatchNorm2d."""
    raw = []
    r = -1
    for _ in range(pool_every):
        in_chan = chanels if r == -1 else filters[r]
        out_chan = filters[r + 1]
        key, kw, kb, kg, kbeta, km, kv = jax.random.split(key, 7)
        bound = 1.0 / jnp.sqrt(jnp.float32(in_chan * 9))
        w = jax.random.uniform(kw, (out_chan, in_chan, 3, 3),
                               minval=-bound, maxval=bound, dtype=jnp.float32)
        b = jax.random.uniform(kb, (out_chan,), minval=-bound, maxval=bound,
                               dtype=jnp.float32)
        gamma = 1.0 + 0.1 * jax.random.normal(kg, (out_chan,), jnp.float32)
        beta = 0.1 * jax.random.normal(kbeta, (out_chan,), jnp.float32)
        mean = 0.1 * jax.random.normal(km, (out_chan,), jnp.float32)
        var = jnp.abs(jax.random.normal(kv, (out_chan,), jnp.float32)) + 0.5
        raw.append((w, b, gamma, beta, mean, var))
        r += 1
    return raw


def fold_block(w, b, gamma, beta, mean, var, Wd):
    """Fold conv bias + eval-mode BatchNorm into per-lane scale/shift, and expand
    the 3x3 conv weight into three row-band matrices (Wd*Cin, Wd*Cout), one per
    vertical tap dy.  Column j = w*Cout + cout; row k = (w+dx-1)*Cin + cin holds
    W[cout, cin, dy, dx] (out-of-range horizontal taps stay zero == pad=1)."""
    cout, cin = w.shape[0], w.shape[1]
    scale = gamma / jnp.sqrt(var + EPS)
    shift = (b - mean) * scale + beta
    bands = []
    for dy in range(3):
        we = jnp.zeros((Wd, cin, Wd, cout), jnp.float32)
        for dx in range(3):
            tap = jnp.transpose(w[:, :, dy, dx])                   # (cin, cout)
            band = jnp.eye(Wd, k=1 - dx, dtype=jnp.float32)        # row i = col j + dx - 1
            we = we + band[:, None, :, None] * tap[None, :, None, :]
        bands.append(we.reshape(Wd * cin, Wd * cout))
    we_stack = jnp.stack(bands, axis=0)                            # (3, Wd*cin, Wd*cout)
    sc = jnp.tile(scale, Wd).reshape(1, Wd * cout)
    sh = jnp.tile(shift, Wd).reshape(1, Wd * cout)
    return we_stack, sc, sh


def residual_projection(cin, cout, Wd):
    """0/1 matrix P (Wd*cin, Wd*cout): x-row @ P == x channel-padded at the FRONT
    to cout channels, flattened lane-dense as (w*cout + c)."""
    sel = jnp.zeros((cin, cout), jnp.float32).at[
        jnp.arange(cin), (cout - cin) + jnp.arange(cin)].set(1.0)
    eye_w = jnp.eye(Wd, dtype=jnp.float32)
    p = eye_w[:, None, :, None] * sel[None, :, None, :]
    return p.reshape(Wd * cin, Wd * cout)


# ---------------- pure-JAX reference (for correctness check) ----------------

def ref_forward(x_nchw, raw_params, filters):
    h = x_nchw
    for (w, b, gamma, beta, mean, var) in raw_params:
        h = lax.conv_general_dilated(h, w, (1, 1), 'SAME',
                                     dimension_numbers=('NCHW', 'OIHW', 'NCHW'))
        h = h + b[None, :, None, None]
        h = ((h - mean[None, :, None, None])
             * (gamma / jnp.sqrt(var + EPS))[None, :, None, None]
             + beta[None, :, None, None])
        h = jnp.maximum(h, 0.0)
    c_out = filters[-1]
    x1 = jnp.pad(x_nchw, ((0, 0), (c_out - x_nchw.shape[1], 0), (0, 0), (0, 0)))
    return h + x1


if __name__ == "__main__":
    # MyResBlock(chanels=4, pool_every=2, filters=[8, 8])
    chanels, pool_every, filters = 4, 2, [8, 8]
    N, H, W = 2, 16, 16

    key = jax.random.PRNGKey(0)
    kx, kp = jax.random.split(key)
    x = jax.random.normal(kx, (N, chanels, H, W), jnp.float32)

    raw = init_raw_params(kp, chanels, pool_every, filters)
    folded = [fold_block(*blk, W) for blk in raw]

    out = my_res_block_forward(x, folded)
    out = jax.block_until_ready(out)

    ref = ref_forward(x, raw, filters)
    assert out.shape == (N, filters[-1], H, W), out.shape
    assert jnp.allclose(out, ref, atol=1e-4, rtol=1e-4), \
        float(jnp.max(jnp.abs(out - ref)))

    print("KERNEL_OK")
</pallas_src>

<mosaic_0001>
module attributes {stable_mosaic.version = 11 : i64} {
  func.func @_resblock_kernel(%arg0: i32, %arg1: memref<2x16x64xf32, #tpu.memory_space<vmem>>, %arg2: memref<3x64x128xf32, #tpu.memory_space<vmem>>, %arg3: memref<1x128xf32, #tpu.memory_space<vmem>>, %arg4: memref<1x128xf32, #tpu.memory_space<vmem>>, %arg5: memref<3x128x128xf32, #tpu.memory_space<vmem>>, %arg6: memref<1x128xf32, #tpu.memory_space<vmem>>, %arg7: memref<1x128xf32, #tpu.memory_space<vmem>>, %arg8: memref<64x128xf32, #tpu.memory_space<vmem>>, %arg9: memref<2x16x128xf32, #tpu.memory_space<vmem>>, %arg10: memref<2x18x64xf32, #tpu.memory_space<vmem>>, %arg11: memref<2x18x128xf32, #tpu.memory_space<vmem>>) attributes {dimension_semantics = [#tpu.dimension_semantics<parallel>], iteration_bounds = array<i64: 1>, scalar_prefetch = 0 : i64, scratch_operands = 2 : i64, tpu.core_type = #tpu.core_type<tc>, window_params = [{pipeline_mode = #tpu.pipeline_mode<synchronous>, transform_indices = @transform_0, window_bounds = array<i64: 2, 16, 64>}, {pipeline_mode = #tpu.pipeline_mode<synchronous>, transform_indices = @transform_1, window_bounds = array<i64: 3, 64, 128>}, {pipeline_mode = #tpu.pipeline_mode<synchronous>, transform_indices = @transform_2, window_bounds = array<i64: 1, 128>}, {pipeline_mode = #tpu.pipeline_mode<synchronous>, transform_indices = @transform_3, window_bounds = array<i64: 1, 128>}, {pipeline_mode = #tpu.pipeline_mode<synchronous>, transform_indices = @transform_4, window_bounds = array<i64: 3, 128, 128>}, {pipeline_mode = #tpu.pipeline_mode<synchronous>, transform_indices = @transform_5, window_bounds = array<i64: 1, 128>}, {pipeline_mode = #tpu.pipeline_mode<synchronous>, transform_indices = @transform_6, window_bounds = array<i64: 1, 128>}, {pipeline_mode = #tpu.pipeline_mode<synchronous>, transform_indices = @transform_7, window_bounds = array<i64: 64, 128>}, {pipeline_mode = #tpu.pipeline_mode<synchronous>, transform_indices = @transform_8, window_bounds = array<i64: 2, 16, 128>}]} {
    %cst = arith.constant 0.000000e+00 : f32
    %0 = vector.broadcast %cst : f32 to vector<2x1x64xf32>
    %c0 = arith.constant 0 : index
    %c0_0 = arith.constant 0 : index
    %c0_1 = arith.constant 0 : index
    %1 = vector.load %arg10[%c0, %c0_0, %c0_1] : memref<2x18x64xf32, #tpu.memory_space<vmem>>, vector<2x1x64xf32>
    tpu.vector_store %arg10[%c0, %c0_0, %c0_1], %0 {strides = array<i32>} : memref<2x18x64xf32, #tpu.memory_space<vmem>>, vector<2x1x64xf32>,
    %c0_2 = arith.constant 0 : index
    %c17 = arith.constant 17 : index
    %c0_3 = arith.constant 0 : index
    %2 = vector.load %arg10[%c0_2, %c17, %c0_3] : memref<2x18x64xf32, #tpu.memory_space<vmem>>, vector<2x1x64xf32>
    tpu.vector_store %arg10[%c0_2, %c17, %c0_3], %0 {strides = array<i32>} : memref<2x18x64xf32, #tpu.memory_space<vmem>>, vector<2x1x64xf32>,
    %c0_4 = arith.constant 0 : index
    %c0_5 = arith.constant 0 : index
    %c0_6 = arith.constant 0 : index
    %3 = vector.load %arg1[%c0_4, %c0_5, %c0_6] : memref<2x16x64xf32, #tpu.memory_space<vmem>>, vector<2x16x64xf32>
    %c0_7 = arith.constant 0 : index
    %c1 = arith.constant 1 : index
    %c0_8 = arith.constant 0 : index
    %4 = vector.load %arg10[%c0_7, %c1, %c0_8] : memref<2x18x64xf32, #tpu.memory_space<vmem>>, vector<2x16x64xf32>
    tpu.vector_store %arg10[%c0_7, %c1, %c0_8], %3 {strides = array<i32>} : memref<2x18x64xf32, #tpu.memory_space<vmem>>, vector<2x16x64xf32>,
    %cst_9 = arith.constant 0.000000e+00 : f32
    %5 = vector.broadcast %cst_9 : f32 to vector<32x128xf32>
    %c0_10 = arith.constant 0 : index
    %c0_11 = arith.constant 0 : index
    %c0_12 = arith.constant 0 : index
    %6 = vector.load %arg10[%c0_10, %c0_11, %c0_12] : memref<2x18x64xf32, #tpu.memory_space<vmem>>, vector<2x16x64xf32>
    %7 = vector.shape_cast %6 : vector<2x16x64xf32> to vector<32x64xf32>
    %c0_13 = arith.constant 0 : index
    %c0_14 = arith.constant 0 : index
    %c0_15 = arith.constant 0 : index
    %8 = vector.load %arg2[%c0_13, %c0_14, %c0_15] : memref<3x64x128xf32, #tpu.memory_space<vmem>>, vector<1x64x128xf32>
    %9 = vector.shape_cast %8 : vector<1x64x128xf32> to vector<64x128xf32>
    %cst_16 = arith.constant dense<0.000000e+00> : vector<32x128xf32>
    %10 = tpu.matmul %7, %9, %cst_16 {dimension_numbers = #tpu.dot_dimension_numbers<[1], [0], [0], [1], [0, 0, 1, 1], [], []>} : vector<32x64xf32>, vector<64x128xf32>, vector<32x128xf32> -> vector<32x128xf32>
    %11 = arith.addf %5, %10 : vector<32x128xf32>
    %c0_17 = arith.constant 0 : index
    %c1_18 = arith.constant 1 : index
    %c0_19 = arith.constant 0 : index
    %12 = vector.load %arg10[%c0_17, %c1_18, %c0_19] : memref<2x18x64xf32, #tpu.memory_space<vmem>>, vector<2x16x64xf32>
    %13 = vector.shape_cast %12 : vector<2x16x64xf32> to vector<32x64xf32>
    %c1_20 = arith.constant 1 : index
    %c0_21 = arith.constant 0 : index
    %c0_22 = arith.constant 0 : index
    %14 = vector.load %arg2[%c1_20, %c0_21, %c0_22] : memref<3x64x128xf32, #tpu.memory_space<vmem>>, vector<1x64x128xf32>
    %15 = vector.shape_cast %14 : vector<1x64x128xf32> to vector<64x128xf32>
    %cst_23 = arith.constant dense<0.000000e+00> : vector<32x128xf32>
    %16 = tpu.matmul %13, %15, %cst_23 {dimension_numbers = #tpu.dot_dimension_numbers<[1], [0], [0], [1], [0, 0, 1, 1], [], []>} : vector<32x64xf32>, vector<64x128xf32>, vector<32x128xf32> -> vector<32x128xf32>
    %17 = arith.addf %11, %16 : vector<32x128xf32>
    %c0_24 = arith.constant 0 : index
    %c2 = arith.constant 2 : index
    %c0_25 = arith.constant 0 : index
    %18 = vector.load %arg10[%c0_24, %c2, %c0_25] : memref<2x18x64xf32, #tpu.memory_space<vmem>>, vector<2x16x64xf32>
    %19 = vector.shape_cast %18 : vector<2x16x64xf32> to vector<32x64xf32>
    %c2_26 = arith.constant 2 : index
    %c0_27 = arith.constant 0 : index
    %c0_28 = arith.constant 0 : index
    %20 = vector.load %arg2[%c2_26, %c0_27, %c0_28] : memref<3x64x128xf32, #tpu.memory_space<vmem>>, vector<1x64x128xf32>
    %21 = vector.shape_cast %20 : vector<1x64x128xf32> to vector<64x128xf32>
    %cst_29 = arith.constant dense<0.000000e+00> : vector<32x128xf32>
    %22 = tpu.matmul %19, %21, %cst_29 {dimension_numbers = #tpu.dot_dimension_numbers<[1], [0], [0], [1], [0, 0, 1, 1], [], []>} : vector<32x64xf32>, vector<64x128xf32>, vector<32x128xf32> -> vector<32x128xf32>
    %23 = arith.addf %17, %22 : vector<32x128xf32>
    %c0_30 = arith.constant 0 : index
    %c0_31 = arith.constant 0 : index
    %24 = vector.load %arg3[%c0_30, %c0_31] : memref<1x128xf32, #tpu.memory_space<vmem>>, vector<1x128xf32>
    %25 = vector.broadcast %24 : vector<1x128xf32> to vector<32x128xf32>
    %26 = arith.mulf %23, %25 : vector<32x128xf32>
    %c0_32 = arith.constant 0 : index
    %c0_33 = arith.constant 0 : index
    %27 = vector.load %arg4[%c0_32, %c0_33] : memref<1x128xf32, #tpu.memory_space<vmem>>, vector<1x128xf32>
    %28 = vector.broadcast %27 : vector<1x128xf32> to vector<32x128xf32>
    %29 = arith.addf %26, %28 : vector<32x128xf32>
    %cst_34 = arith.constant 0.000000e+00 : f32
    %30 = vector.broadcast %cst_34 : f32 to vector<32x128xf32>
    %31 = arith.maximumf %29, %30 : vector<32x128xf32>
    %cst_35 = arith.constant 0.000000e+00 : f32
    %32 = vector.broadcast %cst_35 : f32 to vector<2x1x128xf32>
    %c0_36 = arith.constant 0 : index
    %c0_37 = arith.constant 0 : index
    %c0_38 = arith.constant 0 : index
    %33 = vector.load %arg11[%c0_36, %c0_37, %c0_38] : memref<2x18x128xf32, #tpu.memory_space<vmem>>, vector<2x1x128xf32>
    tpu.vector_store %arg11[%c0_36, %c0_37, %c0_38], %32 {strides = array<i32>} : memref<2x18x128xf32, #tpu.memory_space<vmem>>, vector<2x1x128xf32>,
    %c0_39 = arith.constant 0 : index
    %c17_40 = arith.constant 17 : index
    %c0_41 = arith.constant 0 : index
    %34 = vector.load %arg11[%c0_39, %c17_40, %c0_41] : memref<2x18x128xf32, #tpu.memory_space<vmem>>, vector<2x1x128xf32>
    tpu.vector_store %arg11[%c0_39, %c17_40, %c0_41], %32 {strides = array<i32>} : memref<2x18x128xf32, #tpu.memory_space<vmem>>, vector<2x1x128xf32>,
    %35 = vector.shape_cast %31 : vector<32x128xf32> to vector<2x16x128xf32>
    %c0_42 = arith.constant 0 : index
    %c1_43 = arith.constant 1 : index
    %c0_44 = arith.constant 0 : index
    %36 = vector.load %arg11[%c0_42, %c1_43, %c0_44] : memref<2x18x128xf32, #tpu.memory_space<vmem>>, vector<2x16x128xf32>
    tpu.vector_store %arg11[%c0_42, %c1_43, %c0_44], %35 {strides = array<i32>} : memref<2x18x128xf32, #tpu.memory_space<vmem>>, vector<2x16x128xf32>,
    %cst_45 = arith.constant 0.000000e+00 : f32
    %37 = vector.broadcast %cst_45 : f32 to vector<32x128xf32>
    %c0_46 = arith.constant 0 : index
    %c0_47 = arith.constant 0 : index
    %c0_48 = arith.constant 0 : index
    %38 = vector.load %arg11[%c0_46, %c0_47, %c0_48] : memref<2x18x128xf32, #tpu.memory_space<vmem>>, vector<2x16x128xf32>
    %39 = vector.shape_cast %38 : vector<2x16x128xf32> to vector<32x128xf32>
    %c0_49 = arith.constant 0 : index
    %c0_50 = arith.constant 0 : index
    %c0_51 = arith.constant 0 : index
    %40 = vector.load %arg5[%c0_49, %c0_50, %c0_51] : memref<3x128x128xf32, #tpu.memory_space<vmem>>, vector<1x128x128xf32>
    %41 = vector.shape_cast %40 : vector<1x128x128xf32> to vector<128x128xf32>
    %cst_52 = arith.constant dense<0.000000e+00> : vector<32x128xf32>
    %42 = tpu.matmul %39, %41, %cst_52 {dimension_numbers = #tpu.dot_dimension_numbers<[1], [0], [0], [1], [0, 0, 1, 1], [], []>} : vector<32x128xf32>, vector<128x128xf32>, vector<32x128xf32> -> vector<32x128xf32>
    %43 = arith.addf %37, %42 : vector<32x128xf32>
    %c0_53 = arith.constant 0 : index
    %c1_54 = arith.constant 1 : index
    %c0_55 = arith.constant 0 : index
    %44 = vector.load %arg11[%c0_53, %c1_54, %c0_55] : memref<2x18x128xf32, #tpu.memory_space<vmem>>, vector<2x16x128xf32>
    %45 = vector.shape_cast %44 : vector<2x16x128xf32> to vector<32x128xf32>
    %c1_56 = arith.constant 1 : index
    %c0_57 = arith.constant 0 : index
    %c0_58 = arith.constant 0 : index
    %46 = vector.load %arg5[%c1_56, %c0_57, %c0_58] : memref<3x128x128xf32, #tpu.memory_space<vmem>>, vector<1x128x128xf32>
    %47 = vector.shape_cast %46 : vector<1x128x128xf32> to vector<128x128xf32>
    %cst_59 = arith.constant dense<0.000000e+00> : vector<32x128xf32>
    %48 = tpu.matmul %45, %47, %cst_59 {dimension_numbers = #tpu.dot_dimension_numbers<[1], [0], [0], [1], [0, 0, 1, 1], [], []>} : vector<32x128xf32>, vector<128x128xf32>, vector<32x128xf32> -> vector<32x128xf32>
    %49 = arith.addf %43, %48 : vector<32x128xf32>
    %c0_60 = arith.constant 0 : index
    %c2_61 = arith.constant 2 : index
    %c0_62 = arith.constant 0 : index
    %50 = vector.load %arg11[%c0_60, %c2_61, %c0_62] : memref<2x18x128xf32, #tpu.memory_space<vmem>>, vector<2x16x128xf32>
    %51 = vector.shape_cast %50 : vector<2x16x128xf32> to vector<32x128xf32>
    %c2_63 = arith.constant 2 : index
    %c0_64 = arith.constant 0 : index
    %c0_65 = arith.constant 0 : index
    %52 = vector.load %arg5[%c2_63, %c0_64, %c0_65] : memref<3x128x128xf32, #tpu.memory_space<vmem>>, vector<1x128x128xf32>
    %53 = vector.shape_cast %52 : vector<1x128x128xf32> to vector<128x128xf32>
    %cst_66 = arith.constant dense<0.000000e+00> : vector<32x128xf32>
    %54 = tpu.matmul %51, %53, %cst_66 {dimension_numbers = #tpu.dot_dimension_numbers<[1], [0], [0], [1], [0, 0, 1, 1], [], []>} : vector<32x128xf32>, vector<128x128xf32>, vector<32x128xf32> -> vector<32x128xf32>
    %55 = arith.addf %49, %54 : vector<32x128xf32>
    %c0_67 = arith.constant 0 : index
    %c0_68 = arith.constant 0 : index
    %56 = vector.load %arg6[%c0_67, %c0_68] : memref<1x128xf32, #tpu.memory_space<vmem>>, vector<1x128xf32>
    %57 = vector.broadcast %56 : vector<1x128xf32> to vector<32x128xf32>
    %58 = arith.mulf %55, %57 : vector<32x128xf32>
    %c0_69 = arith.constant 0 : index
    %c0_70 = arith.constant 0 : index
    %59 = vector.load %arg7[%c0_69, %c0_70] : memref<1x128xf32, #tpu.memory_space<vmem>>, vector<1x128xf32>
    %60 = vector.broadcast %59 : vector<1x128xf32> to vector<32x128xf32>
    %61 = arith.addf %58, %60 : vector<32x128xf32>
    %cst_71 = arith.constant 0.000000e+00 : f32
    %62 = vector.broadcast %cst_71 : f32 to vector<32x128xf32>
    %63 = arith.maximumf %61, %62 : vector<32x128xf32>
    %c0_72 = arith.constant 0 : index
    %c0_73 = arith.constant 0 : index
    %c0_74 = arith.constant 0 : index
    %64 = vector.load %arg1[%c0_72, %c0_73, %c0_74] : memref<2x16x64xf32, #tpu.memory_space<vmem>>, vector<2x16x64xf32>
    %65 = vector.shape_cast %64 : vector<2x16x64xf32> to vector<32x64xf32>
    %c0_75 = arith.constant 0 : index
    %c0_76 = arith.constant 0 : index
    %66 = vector.load %arg8[%c0_75, %c0_76] : memref<64x128xf32, #tpu.memory_space<vmem>>, vector<64x128xf32>
    %cst_77 = arith.constant dense<0.000000e+00> : vector<32x128xf32>
    %67 = tpu.matmul %65, %66, %cst_77 {dimension_numbers = #tpu.dot_dimension_numbers<[1], [0], [0], [1], [0, 0, 1, 1], [], []>} : vector<32x64xf32>, vector<64x128xf32>, vector<32x128xf32> -> vector<32x128xf32>
    %68 = arith.addf %63, %67 : vector<32x128xf32>
    %69 = vector.shape_cast %68 : vector<32x128xf32> to vector<2x16x128xf32>
    %c0_78 = arith.constant 0 : index
    %c0_79 = arith.constant 0 : index
    %c0_80 = arith.constant 0 : index
    %70 = vector.load %arg9[%c0_78, %c0_79, %c0_80] : memref<2x16x128xf32, #tpu.memory_space<vmem>>, vector<2x16x128xf32>
    tpu.vector_store %arg9[%c0_78, %c0_79, %c0_80], %69 {strides = array<i32>} : memref<2x16x128xf32, #tpu.memory_space<vmem>>, vector<2x16x128xf32>,
    return
  }
  func.func @transform_0(%arg0: i32) -> (i32, i32, i32) {
    %c0_i32 = arith.constant 0 : i32
    %c0_i32_0 = arith.constant 0 : i32
    %c0_i32_1 = arith.constant 0 : i32
    %c0_i32_2 = arith.constant 0 : i32
    return %c0_i32, %c0_i32_0, %c0_i32_1 : i32, i32, i32
  }
  func.func @transform_1(%arg0: i32) -> (i32, i32, i32) {
    %c0_i32 = arith.constant 0 : i32
    %c0_i32_0 = arith.constant 0 : i32
    %c0_i32_1 = arith.constant 0 : i32
    %c0_i32_2 = arith.constant 0 : i32
    return %c0_i32, %c0_i32_0, %c0_i32_1 : i32, i32, i32
  }
  func.func @transform_2(%arg0: i32) -> (i32, i32) {
    %c0_i32 = arith.constant 0 : i32
    %c0_i32_0 = arith.constant 0 : i32
    %c0_i32_1 = arith.constant 0 : i32
    return %c0_i32, %c0_i32_0 : i32, i32
  }
  func.func @transform_3(%arg0: i32) -> (i32, i32) {
    %c0_i32 = arith.constant 0 : i32
    %c0_i32_0 = arith.constant 0 : i32
    %c0_i32_1 = arith.constant 0 : i32
    return %c0_i32, %c0_i32_0 : i32, i32
  }
  func.func @transform_4(%arg0: i32) -> (i32, i32, i32) {
    %c0_i32 = arith.constant 0 : i32
    %c0_i32_0 = arith.constant 0 : i32
    %c0_i32_1 = arith.constant 0 : i32
    %c0_i32_2 = arith.constant 0 : i32
    return %c0_i32, %c0_i32_0, %c0_i32_1 : i32, i32, i32
  }
  func.func @transform_5(%arg0: i32) -> (i32, i32) {
    %c0_i32 = arith.constant 0 : i32
    %c0_i32_0 = arith.constant 0 : i32
    %c0_i32_1 = arith.constant 0 : i32
    return %c0_i32, %c0_i32_0 : i32, i32
  }
  func.func @transform_6(%arg0: i32) -> (i32, i32) {
    %c0_i32 = arith.constant 0 : i32
    %c0_i32_0 = arith.constant 0 : i32
    %c0_i32_1 = arith.constant 0 : i32
    return %c0_i32, %c0_i32_0 : i32, i32
  }
  func.func @transform_7(%arg0: i32) -> (i32, i32) {
    %c0_i32 = arith.constant 0 : i32
    %c0_i32_0 = arith.constant 0 : i32
    %c0_i32_1 = arith.constant 0 : i32
    return %c0_i32, %c0_i32_0 : i32, i32
  }
  func.func @transform_8(%arg0: i32) -> (i32, i32, i32) {
    %c0_i32 = arith.constant 0 : i32
    %c0_i32_0 = arith.constant 0 : i32
    %c0_i32_1 = arith.constant 0 : i32
    %c0_i32_2 = arith.constant 0 : i32
    return %c0_i32, %c0_i32_0, %c0_i32_1 : i32, i32, i32
  }
}

</mosaic_0001>

<llo_original>
// kernel: tpu_custom_call.1
$region0: #{tpu_custom_call.1}
  #allocation0 [shape = 'u32[]', space=smem, size = 0x4, offset = 0x4, fixed_abs, tag = 'smem constant byte address 0x4 - core index']
  #allocation1 [shape = 'u32[144,128]{1,0:T(1,128)}', space=vmem, size = 0x12000, scoped, tag = 'internal scratch']
  #allocation2 [shape = 'f32[2,18,64]{2,1,0:T(8,128)}', space=vmem, size = 0x6000, scoped, tag = 'scratch operand']
  #allocation3 [shape = 'f32[2,18,128]{2,1,0:T(8,128)}', space=vmem, size = 0x6000, scoped, tag = 'scratch operand']
  %s0 = inlined_call_operand.hbm [shape: f32[2,16,64], index: 0, kind: input, shape index: {}]
  %s1 = inlined_call_operand.hbm [shape: f32[3,64,128], index: 1, kind: input, shape index: {}]
  %s2 = inlined_call_operand.vmem [shape: f32[1,128], index: 2, kind: input, shape index: {}]
  %s3 = inlined_call_operand.vmem [shape: f32[1,128], index: 3, kind: input, shape index: {}]
  %s4 = inlined_call_operand.hbm [shape: f32[3,128,128], index: 4, kind: input, shape index: {}]
  %s5 = inlined_call_operand.vmem [shape: f32[1,128], index: 5, kind: input, shape index: {}]
  %s6 = inlined_call_operand.vmem [shape: f32[1,128], index: 6, kind: input, shape index: {}]
  %s7 = inlined_call_operand.hbm [shape: f32[64,128], index: 7, kind: input, shape index: {}]
  %s8 = inlined_call_operand.hbm [shape: f32[2,16,128], index: 8, kind: output, shape index: {}]
  %s9 = sld [smem:[#allocation0]]
  $region58: #{tpu_custom_call.1} parent=0
    _
  %s11 = ssub.s32 1, %s9
  %s12 = scalar_select 0, %s11, %s9
  $region1: #{tpu_custom_call.1} parent=0
    #allocation4 [shape = 'u8[16384]{0}', space=vmem, size = 0x4000, scoped, tag = 'input window, operand 0, single buffered']
    #allocation5 [shape = 's32[1]{0}', space=sflag, size = 0x4, scoped, tag = 'scoped memory for tpu_custom_call.1']
    #allocation6 [shape = 's32[1]{0}', space=sflag, size = 0x4, scoped, tag = 'scoped memory for tpu_custom_call.1']
    #allocation7 [shape = 'u8[98304]{0}', space=vmem, size = 0x18000, scoped, tag = 'input window, operand 1, single buffered']
    #allocation8 [shape = 's32[1]{0}', space=sflag, size = 0x4, scoped, tag = 'scoped memory for tpu_custom_call.1']
    #allocation9 [shape = 'u8[196608]{0}', space=vmem, size = 0x30000, scoped, tag = 'input window, operand 4, single buffered']
    #allocation10 [shape = 'u8[32768]{0}', space=vmem, size = 0x8000, scoped, tag = 'input window, operand 7, single buffered']
    #allocation11 [shape = 's32[1]{0}', space=sflag, size = 0x4, scoped, tag = 'scoped memory for tpu_custom_call.1']
    #allocation12 [shape = 'u8[16384]{0}', space=vmem, size = 0x4000, scoped, tag = 'output window, operand 0, single buffered']
    %13 = vsyncpa [#allocation5], 0
    %14 = vsyncpa [#allocation8], 0
    %15 = vsyncpa [#allocation11], 0
    %16 = vsyncpa [#allocation6], 0
    // Predicated region
    $region2: #{tpu_custom_call.1} parent=1 // pred_check
      _
    $region3: #{tpu_custom_call.1} parent=1 // pred_check_branch
      %18 = sbr.rel (0) target = $region5
    $region4: #{tpu_custom_call.1} parent=1 // pred_region
      %s20 = ssub.s32 512, 512
      %21 = vsyncadd [#allocation5], %s20
      %s22 = sshll.u32 [#allocation4], 4
      %s23 = int_to_ptr.vmem [resolvable:$true] %s22
      %28 = dma.hbm_to_vmem [thread:$0]  %s0, 512, %s23, [#allocation5], 128, 128, 8
    $region5: #{tpu_custom_call.1} parent=1 // pred_fallthru
      _
    // Predicated region
    $region6: #{tpu_custom_call.1} parent=1 // pred_check
      _
    $region7: #{tpu_custom_call.1} parent=1 // pred_check_branch
      %30 = sbr.rel (0) target = $region9
    $region8: #{tpu_custom_call.1} parent=1 // pred_region
      %s32 = ssub.s32 3072, 3072
      %33 = vsyncadd [#allocation8], %s32
      %s34 = sshll.u32 [#allocation7], 4
      %s35 = int_to_ptr.vmem [resolvable:$true] %s34
      %40 = dma.hbm_to_vmem [thread:$0]  %s1, 3072, %s35, [#allocation8], 128, 128, 8
    $region9: #{tpu_custom_call.1} parent=1 // pred_fallthru
      _
    // Predicated region
    $region10: #{tpu_custom_call.1} parent=1 // pred_check
      _
    $region11: #{tpu_custom_call.1} parent=1 // pred_check_branch
      %42 = sbr.rel (0) target = $region13
    $region12: #{tpu_custom_call.1} parent=1 // pred_region
      _
    $region13: #{tpu_custom_call.1} parent=1 // pred_fallthru
      _
    // Predicated region
    $region14: #{tpu_custom_call.1} parent=1 // pred_check
      _
    $region15: #{tpu_custom_call.1} parent=1 // pred_check_branch
      %44 = sbr.rel (0) target = $region17
    $region16: #{tpu_custom_call.1} parent=1 // pred_region
      _
    $region17: #{tpu_custom_call.1} parent=1 // pred_fallthru
      _
    // Predicated region
    $region18: #{tpu_custom_call.1} parent=1 // pred_check
      _
    $region19: #{tpu_custom_call.1} parent=1 // pred_check_branch
      %46 = sbr.rel (0) target = $region21
    $region20: #{tpu_custom_call.1} parent=1 // pred_region
      %s48 = ssub.s32 6144, 6144
      %49 = vsyncadd [#allocation8], %s48
      %s50 = sshll.u32 [#allocation9], 4
      %s51 = int_to_ptr.vmem [resolvable:$true] %s50
      %56 = dma.hbm_to_vmem [thread:$0]  %s4, 6144, %s51, [#allocation8], 128, 128, 8
    $region21: #{tpu_custom_call.1} parent=1 // pred_fallthru
      _
    // Predicated region
    $region22: #{tpu_custom_call.1} parent=1 // pred_check
      _
    $region23: #{tpu_custom_call.1} parent=1 // pred_check_branch
      %58 = sbr.rel (0) target = $region25
    $region24: #{tpu_custom_call.1} parent=1 // pred_region
      _
    $region25: #{tpu_custom_call.1} parent=1 // pred_fallthru
      _
    // Predicated region
    $region26: #{tpu_custom_call.1} parent=1 // pred_check
      _
    $region27: #{tpu_custom_call.1} parent=1 // pred_check_branch
      %60 = sbr.rel (0) target = $region29
    $region28: #{tpu_custom_call.1} parent=1 // pred_region
      _
    $region29: #{tpu_custom_call.1} parent=1 // pred_fallthru
      _
    // Predicated region
    $region30: #{tpu_custom_call.1} parent=1 // pred_check
      _
    $region31: #{tpu_custom_call.1} parent=1 // pred_check_branch
      %62 = sbr.rel (0) target = $region33
    $region32: #{tpu_custom_call.1} parent=1 // pred_region
      %s64 = ssub.s32 1024, 1024
      %65 = vsyncadd [#allocation11], %s64
      %s66 = sshll.u32 [#allocation10], 4
      %s67 = int_to_ptr.vmem [resolvable:$true] %s66
      %72 = dma.hbm_to_vmem [thread:$0]  %s7, 1024, %s67, [#allocation11], 128, 128, 8
    $region33: #{tpu_custom_call.1} parent=1 // pred_fallthru
      _
    // Predicated region
    $region34: #{tpu_custom_call.1} parent=1 // pred_check
      _
    $region35: #{tpu_custom_call.1} parent=1 // pred_check_branch
      %74 = sbr.rel (0) target = $region37
    $region36: #{tpu_custom_call.1} parent=1 // pred_region
      %75 = dma.done [#allocation5], 512
    $region37: #{tpu_custom_call.1} parent=1 // pred_fallthru
      _
    // Predicated region
    $region38: #{tpu_custom_call.1} parent=1 // pred_check
      _
    $region39: #{tpu_custom_call.1} parent=1 // pred_check_branch
      %77 = sbr.rel (0) target = $region41
    $region40: #{tpu_custom_call.1} parent=1 // pred_region
      %78 = dma.done [#allocation8], 3072
    $region41: #{tpu_custom_call.1} parent=1 // pred_fallthru
      _
    // Predicated region
    $region42: #{tpu_custom_call.1} parent=1 // pred_check
      _
    $region43: #{tpu_custom_call.1} parent=1 // pred_check_branch
      %80 = sbr.rel (0) target = $region45
    $region44: #{tpu_custom_call.1} parent=1 // pred_region
      %81 = dma.done [#allocation8], 6144
    $region45: #{tpu_custom_call.1} parent=1 // pred_fallthru
      _
    // Predicated region
    $region46: #{tpu_custom_call.1} parent=1 // pred_check
      _
    $region47: #{tpu_custom_call.1} parent=1 // pred_check_branch
      %83 = sbr.rel (0) target = $region49
    $region48: #{tpu_custom_call.1} parent=1 // pred_region
      %84 = dma.done [#allocation11], 1024
    $region49: #{tpu_custom_call.1} parent=1 // pred_fallthru
      _
    %vm85 = vcmask 516096
    %86 = vst.msk [vmem:[#allocation2] sm:$0x1] %vm85, 0.0
    %87 = vst.msk [vmem:[#allocation2 + $0x18] sm:$0x1] %vm85, 0.0
    %88 = vst.msk [vmem:[#allocation2 + $0x11] sm:$0x1] %vm85, 0.0
    %89 = vst.msk [vmem:[#allocation2 + $0x29] sm:$0x1] %vm85, 0.0
    %v90 = vld [vmem:[#allocation4] sm:$0xff]
    %v91 = vld [vmem:[#allocation4 + $0x8] sm:$0xff]
    %v92 = vld [vmem:[#allocation4 + $0x10] sm:$0xff]
    %v93 = vld [vmem:[#allocation4 + $0x18] sm:$0xff]
    %vm94 = vcmask 523264
    %95 = vst.msk [vmem:[#allocation2 + $0x1] sm:$0xff] %vm94, %v90
    %96 = vst.msk [vmem:[#allocation2 + $0x9] sm:$0xff] %vm94, %v91
    %97 = vst.msk [vmem:[#allocation2 + $0x19] sm:$0xff] %vm94, %v92
    %98 = vst.msk [vmem:[#allocation2 + $0x21] sm:$0xff] %vm94, %v93
    %v99 = vld [vmem:[#allocation2] sm:$0xff]
    %v100 = vld [vmem:[#allocation2 + $0x8] sm:$0xff]
    %v101 = vld [vmem:[#allocation2 + $0x18] sm:$0xff]
    %v102 = vld [vmem:[#allocation2 + $0x20] sm:$0xff]
    %v103 = vld [vmem:[#allocation7] sm:$0xff]
    %v104 = vld [vmem:[#allocation7 + $0x8] sm:$0xff]
    %v105 = vld [vmem:[#allocation7 + $0x10] sm:$0xff]
    %v106 = vld [vmem:[#allocation7 + $0x18] sm:$0xff]
    %v107 = vld [vmem:[#allocation7 + $0x20] sm:$0xff]
    %v108 = vld [vmem:[#allocation7 + $0x28] sm:$0xff]
    %v109 = vld [vmem:[#allocation7 + $0x30] sm:$0xff]
    %v110 = vld [vmem:[#allocation7 + $0x38] sm:$0xff]
    %v111 = vld [vmem:[#allocation2 + $0x1] sm:$0xff]
    %v112 = vld [vmem:[#allocation2 + $0x9] sm:$0xff]
    %v113 = vld [vmem:[#allocation2 + $0x19] sm:$0xff]
    %v114 = vld [vmem:[#allocation2 + $0x21] sm:$0xff]
    %s115 = scalar_lea.vmem [#allocation7], 64
    %v116 = vld [vmem:[%s115] sm:$0xff]
    %v117 = vld [vmem:[%s115 + $0x8] sm:$0xff]
    %v118 = vld [vmem:[%s115 + $0x10] sm:$0xff]
    %v119 = vld [vmem:[%s115 + $0x18] sm:$0xff]
    %v120 = vld [vmem:[%s115 + $0x20] sm:$0xff]
    %v121 = vld [vmem:[%s115 + $0x28] sm:$0xff]
    %v122 = vld [vmem:[%s115 + $0x30] sm:$0xff]
    %v123 = vld [vmem:[%s115 + $0x38] sm:$0xff]
    %v125 = vsel %vm94, %v111, 0
    %v128 = vsel %vm94, %v112, 0
    %v131 = vsel %vm94, %v113, 0
    %v134 = vsel %vm94, %v114, 0
    %136 = vmatprep.subr.mxu0 0.0
    %137 = vmatpush1.msra.mxu0 0.0
    %138 = vmatprep.subr.mxu0 0.0
    %139 = vmatpush1.msra.mxu0 0.0
    %140 = vmatprep.subr.mxu0 0.0
    %141 = vmatpush1.msra.mxu0 0.0
    %142 = vmatprep.subr.mxu0 0.0
    %143 = vmatpush1.msra.mxu0 0.0
    %144 = vmatprep.subr.mxu0 0.0
    %145 = vmatpush1.msra.mxu0 0.0
    %146 = vmatprep.subr.mxu0 0.0
    %147 = vmatpush1.msra.mxu0 0.0
    %148 = vmatprep.subr.mxu0 0.0
    %149 = vmatpush1.msra.mxu0 0.0
    %150 = vmatprep.subr.mxu0 0.0
    %151 = vmatpush1.msra.mxu0 0.0
    %152 = vmatprep.subr.mxu0 0.0
    %153 = vmatpush1.msra.mxu0 %v123
    %154 = vmatprep.subr.mxu0 0.0
    %155 = vmatpush1.msra.mxu0 %v122
    %156 = vmatprep.subr.mxu0 0.0
    %157 = vmatpush1.msra.mxu0 %v121
    %158 = vmatprep.subr.mxu0 0.0
    %159 = vmatpush1.msra.mxu0 %v120
    %160 = vmatprep.subr.mxu0 0.0
    %161 = vmatpush1.msra.mxu0 %v119
    %162 = vmatprep.subr.mxu0 0.0
    %163 = vmatpush1.msra.mxu0 %v118
    %164 = vmatprep.subr.mxu0 0.0
    %165 = vmatpush1.msra.mxu0 %v117
    %166 = vmatprep.subr.mxu0 0.0
    %167 = vmatpush1.msra.mxu0 %v116
    %168 = vmatprep.subr.mxu0 0.0
    %169 = vmatpush2.msra.mxu0 0.0
    %170 = vmatprep.subr.mxu0 0.0
    %171 = vmatpush2.msra.mxu0 0.0
    %172 = vmatprep.subr.mxu0 0.0
    %173 = vmatpush2.msra.mxu0 0.0
    %174 = vmatprep.subr.mxu0 0.0
    %175 = vmatpush2.msra.mxu0 0.0
    %176 = vmatprep.subr.mxu0 0.0
    %177 = vmatpush2.msra.mxu0 0.0
    %178 = vmatprep.subr.mxu0 0.0
    %179 = vmatpush2.msra.mxu0 0.0
    %180 = vmatprep.subr.mxu0 0.0
    %181 = vmatpush2.msra.mxu0 0.0
    %182 = vmatprep.subr.mxu0 0.0
    %183 = vmatpush2.msra.mxu0 0.0
    %184 = vmatprep.subr.mxu0 0.0
    %185 = vmatpush2.msra.mxu0 0.0
    %186 = vmatprep.subr.mxu0 0.0
    %187 = vmatpush2.msra.mxu0 0.0
    %188 = vmatprep.subr.mxu0 0.0
    %189 = vmatpush2.msra.mxu0 0.0
    %190 = vmatprep.subr.mxu0 0.0
    %191 = vmatpush2.msra.mxu0 0.0
    %192 = vmatprep.subr.mxu0 0.0
    %193 = vmatpush2.msra.mxu0 0.0
    %194 = vmatprep.subr.mxu0 0.0
    %195 = vmatpush2.msra.mxu0 0.0
    %196 = vmatprep.subr.mxu0 0.0
    %197 = vmatpush2.msra.mxu0 0.0
    %198 = vmatprep.subr.mxu0 0.0
    %199 = vmatpush2.msra.mxu0 0.0
    %200 = vmatprep.mubr.f32.mxu0 0.0
    %201 = vmatmul.mubr.f32.gmra.mxu0 %v125
    %v202 = vpop.f32.mrf.mxu0
    %v203 = vadd.f32 0.0, %v202
    %v204 = vpop.f32.mrf.mxu0
    %205 = vmatprep.mubr.f32.mxu0 0.0
    %206 = vmatmul.mubr.f32.gmra.mxu0 %v128
    %v207 = vpop.f32.mrf.mxu0
    %v208 = vadd.f32 0.0, %v207
    %v209 = vpop.f32.mrf.mxu0
    %210 = vmatprep.mubr.f32.mxu0 0.0
    %211 = vmatmul.mubr.f32.gmra.mxu0 %v131
    %v212 = vpop.f32.mrf.mxu0
    %v213 = vadd.f32 0.0, %v212
    %v214 = vpop.f32.mrf.mxu0
    %215 = vmatprep.mubr.f32.mxu0 0.0
    %216 = vmatmul.mubr.f32.gmra.mxu0 %v134
    %v217 = vpop.f32.mrf.mxu0
    %v218 = vadd.f32 0.0, %v217
    %v219 = vpop.f32.mrf.mxu0
    %220 = vdwg.mxu0
    %v222 = vsel %vm94, %v99, 0
    %v225 = vsel %vm94, %v100, 0
    %v228 = vsel %vm94, %v101, 0
    %v231 = vsel %vm94, %v102, 0
    %233 = vmatprep.subr.mxu0 0.0
    %234 = vmatpush1.msra.mxu0 0.0
    %235 = vmatprep.subr.mxu0 0.0
    %236 = vmatpush1.msra.mxu0 0.0
    %237 = vmatprep.subr.mxu0 0.0
    %238 = vmatpush1.msra.mxu0 0.0
    %239 = vmatprep.subr.mxu0 0.0
    %240 = vmatpush1.msra.mxu0 0.0
    %241 = vmatprep.subr.mxu0 0.0
    %242 = vmatpush1.msra.mxu0 0.0
    %243 = vmatprep.subr.mxu0 0.0
    %244 = vmatpush1.msra.mxu0 0.0
    %245 = vmatprep.subr.mxu0 0.0
    %246 = vmatpush1.msra.mxu0 0.0
    %247 = vmatprep.subr.mxu0 0.0
    %248 = vmatpush1.msra.mxu0 0.0
    %249 = vmatprep.subr.mxu0 0.0
    %250 = vmatpush1.msra.mxu0 %v110
    %251 = vmatprep.subr.mxu0 0.0
    %252 = vmatpush1.msra.mxu0 %v109
    %253 = vmatprep.subr.mxu0 0.0
    %254 = vmatpush1.msra.mxu0 %v108
    %255 = vmatprep.subr.mxu0 0.0
    %256 = vmatpush1.msra.mxu0 %v107
    %257 = vmatprep.subr.mxu0 0.0
    %258 = vmatpush1.msra.mxu0 %v106
    %259 = vmatprep.subr.mxu0 0.0
    %260 = vmatpush1.msra.mxu0 %v105
    %261 = vmatprep.subr.mxu0 0.0
    %262 = vmatpush1.msra.mxu0 %v104
    %263 = vmatprep.subr.mxu0 0.0
    %264 = vmatpush1.msra.mxu0 %v103
    %265 = vmatprep.subr.mxu0 0.0
    %266 = vmatpush2.msra.mxu0 0.0
    %267 = vmatprep.subr.mxu0 0.0
    %268 = vmatpush2.msra.mxu0 0.0
    %269 = vmatprep.subr.mxu0 0.0
    %270 = vmatpush2.msra.mxu0 0.0
    %271 = vmatprep.subr.mxu0 0.0
    %272 = vmatpush2.msra.mxu0 0.0
    %273 = vmatprep.subr.mxu0 0.0
    %274 = vmatpush2.msra.mxu0 0.0
    %275 = vmatprep.subr.mxu0 0.0
    %276 = vmatpush2.msra.mxu0 0.0
    %277 = vmatprep.subr.mxu0 0.0
    %278 = vmatpush2.msra.mxu0 0.0
    %279 = vmatprep.subr.mxu0 0.0
    %280 = vmatpush2.msra.mxu0 0.0
    %281 = vmatprep.subr.mxu0 0.0
    %282 = vmatpush2.msra.mxu0 0.0
    %283 = vmatprep.subr.mxu0 0.0
    %284 = vmatpush2.msra.mxu0 0.0
    %285 = vmatprep.subr.mxu0 0.0
    %286 = vmatpush2.msra.mxu0 0.0
    %287 = vmatprep.subr.mxu0 0.0
    %288 = vmatpush2.msra.mxu0 0.0
    %289 = vmatprep.subr.mxu0 0.0
    %290 = vmatpush2.msra.mxu0 0.0
    %291 = vmatprep.subr.mxu0 0.0
    %292 = vmatpush2.msra.mxu0 0.0
    %293 = vmatprep.subr.mxu0 0.0
    %294 = vmatpush2.msra.mxu0 0.0
    %295 = vmatprep.subr.mxu0 0.0
    %296 = vmatpush2.msra.mxu0 0.0
    %297 = vmatprep.mubr.f32.mxu0 0.0
    %298 = vmatmul.mubr.f32.gmra.mxu0 %v222
    %v299 = vpop.f32.mrf.mxu0
    %v300 = vadd.f32 %v203, %v299
    %v301 = vpop.f32.mrf.mxu0
    %302 = vmatprep.mubr.f32.mxu0 0.0
    %303 = vmatmul.mubr.f32.gmra.mxu0 %v225
    %v304 = vpop.f32.mrf.mxu0
    %v305 = vadd.f32 %v208, %v304
    %v306 = vpop.f32.mrf.mxu0
    %307 = vmatprep.mubr.f32.mxu0 0.0
    %308 = vmatmul.mubr.f32.gmra.mxu0 %v228
    %v309 = vpop.f32.mrf.mxu0
    %v310 = vadd.f32 %v213, %v309
    %v311 = vpop.f32.mrf.mxu0
    %312 = vmatprep.mubr.f32.mxu0 0.0
    %313 = vmatmul.mubr.f32.gmra.mxu0 %v231
    %v314 = vpop.f32.mrf.mxu0
    %v315 = vadd.f32 %v218, %v314
    %v316 = vpop.f32.mrf.mxu0
    %317 = vdwg.mxu0
    %v318 = vld [vmem:[#allocation2 + $0x2] sm:$0xff]
    %v319 = vld [vmem:[#allocation2 + $0xa] sm:$0xff]
    %v320 = vld [vmem:[#allocation2 + $0x1a] sm:$0xff]
    %v321 = vld [vmem:[#allocation2 + $0x22] sm:$0xff]
    %s322 = scalar_lea.vmem [#allocation7], 128
    %v323 = vld [vmem:[%s322] sm:$0xff]
    %v324 = vld [vmem:[%s322 + $0x8] sm:$0xff]
    %v325 = vld [vmem:[%s322 + $0x10] sm:$0xff]
    %v326 = vld [vmem:[%s322 + $0x18] sm:$0xff]
    %v327 = vld [vmem:[%s322 + $0x20] sm:$0xff]
    %v328 = vld [vmem:[%s322 + $0x28] sm:$0xff]
    %v329 = vld [vmem:[%s322 + $0x30] sm:$0xff]
    %v330 = vld [vmem:[%s322 + $0x38] sm:$0xff]
    %v332 = vsel %vm94, %v318, 0
    %v335 = vsel %vm94, %v319, 0
    %v338 = vsel %vm94, %v320, 0
    %v341 = vsel %vm94, %v321, 0
    %343 = vmatprep.subr.mxu0 0.0
    %344 = vmatpush1.msra.mxu0 0.0
    %345 = vmatprep.subr.mxu0 0.0
    %346 = vmatpush1.msra.mxu0 0.0
    %347 = vmatprep.subr.mxu0 0.0
    %348 = vmatpush1.msra.mxu0 0.0
    %349 = vmatprep.subr.mxu0 0.0
    %350 = vmatpush1.msra.mxu0 0.0
    %351 = vmatprep.subr.mxu0 0.0
    %352 = vmatpush1.msra.mxu0 0.0
    %353 = vmatprep.subr.mxu0 0.0
    %354 = vmatpush1.msra.mxu0 0.0
    %355 = vmatprep.subr.mxu0 0.0
    %356 = vmatpush1.msra.mxu0 0.0
    %357 = vmatprep.subr.mxu0 0.0
    %358 = vmatpush1.msra.mxu0 0.0
    %359 = vmatprep.subr.mxu0 0.0
    %360 = vmatpush1.msra.mxu0 %v330
    %361 = vmatprep.subr.mxu0 0.0
    %362 = vmatpush1.msra.mxu0 %v329
    %363 = vmatprep.subr.mxu0 0.0
    %364 = vmatpush1.msra.mxu0 %v328
    %365 = vmatprep.subr.mxu0 0.0
    %366 = vmatpush1.msra.mxu0 %v327
    %367 = vmatprep.subr.mxu0 0.0
    %368 = vmatpush1.msra.mxu0 %v326
    %369 = vmatprep.subr.mxu0 0.0
    %370 = vmatpush1.msra.mxu0 %v325
    %371 = vmatprep.subr.mxu0 0.0
    %372 = vmatpush1.msra.mxu0 %v324
    %373 = vmatprep.subr.mxu0 0.0
    %374 = vmatpush1.msra.mxu0 %v323
    %375 = vmatprep.subr.mxu0 0.0
    %376 = vmatpush2.msra.mxu0 0.0
    %377 = vmatprep.subr.mxu0 0.0
    %378 = vmatpush2.msra.mxu0 0.0
    %379 = vmatprep.subr.mxu0 0.0
    %380 = vmatpush2.msra.mxu0 0.0
    %381 = vmatprep.subr.mxu0 0.0
    %382 = vmatpush2.msra.mxu0 0.0
    %383 = vmatprep.subr.mxu0 0.0
    %384 = vmatpush2.msra.mxu0 0.0
    %385 = vmatprep.subr.mxu0 0.0
    %386 = vmatpush2.msra.mxu0 0.0
    %387 = vmatprep.subr.mxu0 0.0
    %388 = vmatpush2.msra.mxu0 0.0
    %389 = vmatprep.subr.mxu0 0.0
    %390 = vmatpush2.msra.mxu0 0.0
    %391 = vmatprep.subr.mxu0 0.0
    %392 = vmatpush2.msra.mxu0 0.0
    %393 = vmatprep.subr.mxu0 0.0
    %394 = vmatpush2.msra.mxu0 0.0
    %395 = vmatprep.subr.mxu0 0.0
    %396 = vmatpush2.msra.mxu0 0.0
    %397 = vmatprep.subr.mxu0 0.0
    %398 = vmatpush2.msra.mxu0 0.0
    %399 = vmatprep.subr.mxu0 0.0
    %400 = vmatpush2.msra.mxu0 0.0
    %401 = vmatprep.subr.mxu0 0.0
    %402 = vmatpush2.msra.mxu0 0.0
    %403 = vmatprep.subr.mxu0 0.0
    %404 = vmatpush2.msra.mxu0 0.0
    %405 = vmatprep.subr.mxu0 0.0
    %406 = vmatpush2.msra.mxu0 0.0
    %407 = vmatprep.mubr.f32.mxu0 0.0
    %408 = vmatmul.mubr.f32.gmra.mxu0 %v332
    %v409 = vpop.f32.mrf.mxu0
    %v410 = vadd.f32 0.0, %v409
    %v411 = vpop.f32.mrf.mxu0
    %412 = vmatprep.mubr.f32.mxu0 0.0
    %413 = vmatmul.mubr.f32.gmra.mxu0 %v335
    %v414 = vpop.f32.mrf.mxu0
    %v415 = vadd.f32 0.0, %v414
    %v416 = vpop.f32.mrf.mxu0
    %417 = vmatprep.mubr.f32.mxu0 0.0
    %418 = vmatmul.mubr.f32.gmra.mxu0 %v338
    %v419 = vpop.f32.mrf.mxu0
    %v420 = vadd.f32 0.0, %v419
    %v421 = vpop.f32.mrf.mxu0
    %422 = vmatprep.mubr.f32.mxu0 0.0
    %423 = vmatmul.mubr.f32.gmra.mxu0 %v341
    %v424 = vpop.f32.mrf.mxu0
    %v425 = vadd.f32 0.0, %v424
    %v426 = vpop.f32.mrf.mxu0
    %427 = vdwg.mxu0
    %v428 = vadd.f32 %v300, %v410
    %v429 = vadd.f32 %v305, %v415
    %v430 = vadd.f32 %v310, %v420
    %v431 = vadd.f32 %v315, %v425
    %v432 = vld [vmem:[%s2] sm:$0x1]
    %v434 = vlaneseq
    %v435 = vshrl.u32 %v434, 7
    %v436 = vsub.s32 0, %v435
    %v437 = vrot.slane %v432, %v436
    %v439 = vmul.f32 %v428, %v437
    %v440 = vmul.f32 %v429, %v437
    %v441 = vmul.f32 %v430, %v437
    %v442 = vmul.f32 %v431, %v437
    %v443 = vld [vmem:[%s3] sm:$0x1]
    %v445 = vlaneseq
    %v446 = vshrl.u32 %v445, 7
    %v447 = vsub.s32 0, %v446
    %v448 = vrot.slane %v443, %v447
    %v450 = vadd.f32 %v439, %v448
    %v451 = vadd.f32 %v440, %v448
    %v452 = vadd.f32 %v441, %v448
    %v453 = vadd.f32 %v442, %v448
    %v454 = vmax.f32 %v450, 0.0
    %v455 = vmax.f32 %v451, 0.0
    %v456 = vmax.f32 %v452, 0.0
    %v457 = vmax.f32 %v453, 0.0
    %458 = vst [vmem:[#allocation3] sm:$0x1] 0.0
    %459 = vst [vmem:[#allocation3 + $0x18] sm:$0x1] 0.0
    %460 = vst [vmem:[#allocation3 + $0x11] sm:$0x1] 0.0
    %461 = vst [vmem:[#allocation3 + $0x29] sm:$0x1] 0.0
    %462 = vst [vmem:[#allocation3 + $0x1] sm:$0xff] %v454
    %463 = vst [vmem:[#allocation3 + $0x9] sm:$0xff] %v455
    %464 = vst [vmem:[#allocation3 + $0x19] sm:$0xff] %v456
    %465 = vst [vmem:[#allocation3 + $0x21] sm:$0xff] %v457
    %v466 = vld [vmem:[#allocation3] sm:$0xff]
    %v467 = vld [vmem:[#allocation3 + $0x8] sm:$0xff]
    %v468 = vld [vmem:[#allocation3 + $0x18] sm:$0xff]
    %v469 = vld [vmem:[#allocation3 + $0x20] sm:$0xff]
    %v470 = vld [vmem:[#allocation9] sm:$0xff]
    %v471 = vld [vmem:[#allocation9 + $0x8] sm:$0xff]
    %v472 = vld [vmem:[#allocation9 + $0x10] sm:$0xff]
    %v473 = vld [vmem:[#allocation9 + $0x18] sm:$0xff]
    %v474 = vld [vmem:[#allocation9 + $0x20] sm:$0xff]
    %v475 = vld [vmem:[#allocation9 + $0x28] sm:$0xff]
    %v476 = vld [vmem:[#allocation9 + $0x30] sm:$0xff]
    %v477 = vld [vmem:[#allocation9 + $0x38] sm:$0xff]
    %v478 = vld [vmem:[#allocation9 + $0x40] sm:$0xff]
    %v479 = vld [vmem:[#allocation9 + $0x48] sm:$0xff]
    %v480 = vld [vmem:[#allocation9 + $0x50] sm:$0xff]
    %v481 = vld [vmem:[#allocation9 + $0x58] sm:$0xff]
    %v482 = vld [vmem:[#allocation9 + $0x60] sm:$0xff]
    %v483 = vld [vmem:[#allocation9 + $0x68] sm:$0xff]
    %v484 = vld [vmem:[#allocation9 + $0x70] sm:$0xff]
    %v485 = vld [vmem:[#allocation9 + $0x78] sm:$0xff]
    %v486 = vld [vmem:[#allocation3 + $0x1] sm:$0xff]
    %v487 = vld [vmem:[#allocation3 + $0x9] sm:$0xff]
    %v488 = vld [vmem:[#allocation3 + $0x19] sm:$0xff]
    %v489 = vld [vmem:[#allocation3 + $0x21] sm:$0xff]
    %s490 = scalar_lea.vmem [#allocation9], 128
    %v491 = vld [vmem:[%s490] sm:$0xff]
    %v492 = vld [vmem:[%s490 + $0x8] sm:$0xff]
    %v493 = vld [vmem:[%s490 + $0x10] sm:$0xff]
    %v494 = vld [vmem:[%s490 + $0x18] sm:$0xff]
    %v495 = vld [vmem:[%s490 + $0x20] sm:$0xff]
    %v496 = vld [vmem:[%s490 + $0x28] sm:$0xff]
    %v497 = vld [vmem:[%s490 + $0x30] sm:$0xff]
    %v498 = vld [vmem:[%s490 + $0x38] sm:$0xff]
    %v499 = vld [vmem:[%s490 + $0x40] sm:$0xff]
    %v500 = vld [vmem:[%s490 + $0x48] sm:$0xff]
    %v501 = vld [vmem:[%s490 + $0x50] sm:$0xff]
    %v502 = vld [vmem:[%s490 + $0x58] sm:$0xff]
    %v503 = vld [vmem:[%s490 + $0x60] sm:$0xff]
    %v504 = vld [vmem:[%s490 + $0x68] sm:$0xff]
    %v505 = vld [vmem:[%s490 + $0x70] sm:$0xff]
    %v506 = vld [vmem:[%s490 + $0x78] sm:$0xff]
    %507 = vmatprep.subr.mxu0 0.0
    %508 = vmatpush1.msra.mxu0 %v506
    %509 = vmatprep.subr.mxu0 0.0
    %510 = vmatpush1.msra.mxu0 %v505
    %511 = vmatprep.subr.mxu0 0.0
    %512 = vmatpush1.msra.mxu0 %v504
    %513 = vmatprep.subr.mxu0 0.0
    %514 = vmatpush1.msra.mxu0 %v503
    %515 = vmatprep.subr.mxu0 0.0
    %516 = vmatpush1.msra.mxu0 %v502
    %517 = vmatprep.subr.mxu0 0.0
    %518 = vmatpush1.msra.mxu0 %v501
    %519 = vmatprep.subr.mxu0 0.0
    %520 = vmatpush1.msra.mxu0 %v500
    %521 = vmatprep.subr.mxu0 0.0
    %522 = vmatpush1.msra.mxu0 %v499
    %523 = vmatprep.subr.mxu0 0.0
    %524 = vmatpush1.msra.mxu0 %v498
    %525 = vmatprep.subr.mxu0 0.0
    %526 = vmatpush1.msra.mxu0 %v497
    %527 = vmatprep.subr.mxu0 0.0
    %528 = vmatpush1.msra.mxu0 %v496
    %529 = vmatprep.subr.mxu0 0.0
    %530 = vmatpush1.msra.mxu0 %v495
    %531 = vmatprep.subr.mxu0 0.0
    %532 = vmatpush1.msra.mxu0 %v494
    %533 = vmatprep.subr.mxu0 0.0
    %534 = vmatpush1.msra.mxu0 %v493
    %535 = vmatprep.subr.mxu0 0.0
    %536 = vmatpush1.msra.mxu0 %v492
    %537 = vmatprep.subr.mxu0 0.0
    %538 = vmatpush1.msra.mxu0 %v491
    %539 = vmatprep.subr.mxu0 0.0
    %540 = vmatpush2.msra.mxu0 0.0
    %541 = vmatprep.subr.mxu0 0.0
    %542 = vmatpush2.msra.mxu0 0.0
    %543 = vmatprep.subr.mxu0 0.0
    %544 = vmatpush2.msra.mxu0 0.0
    %545 = vmatprep.subr.mxu0 0.0
    %546 = vmatpush2.msra.mxu0 0.0
    %547 = vmatprep.subr.mxu0 0.0
    %548 = vmatpush2.msra.mxu0 0.0
    %549 = vmatprep.subr.mxu0 0.0
    %550 = vmatpush2.msra.mxu0 0.0
    %551 = vmatprep.subr.mxu0 0.0
    %552 = vmatpush2.msra.mxu0 0.0
    %553 = vmatprep.subr.mxu0 0.0
    %554 = vmatpush2.msra.mxu0 0.0
    %555 = vmatprep.subr.mxu0 0.0
    %556 = vmatpush2.msra.mxu0 0.0
    %557 = vmatprep.subr.mxu0 0.0
    %558 = vmatpush2.msra.mxu0 0.0
    %559 = vmatprep.subr.mxu0 0.0
    %560 = vmatpush2.msra.mxu0 0.0
    %561 = vmatprep.subr.mxu0 0.0
    %562 = vmatpush2.msra.mxu0 0.0
    %563 = vmatprep.subr.mxu0 0.0
    %564 = vmatpush2.msra.mxu0 0.0
    %565 = vmatprep.subr.mxu0 0.0
    %566 = vmatpush2.msra.mxu0 0.0
    %567 = vmatprep.subr.mxu0 0.0
    %568 = vmatpush2.msra.mxu0 0.0
    %569 = vmatprep.subr.mxu0 0.0
    %570 = vmatpush2.msra.mxu0 0.0
    %571 = vmatprep.mubr.f32.mxu0 0.0
    %572 = vmatmul.mubr.f32.gmra.mxu0 %v486
    %v573 = vpop.f32.mrf.mxu0
    %v574 = vadd.f32 0.0, %v573
    %v575 = vpop.f32.mrf.mxu0
    %576 = vmatprep.mubr.f32.mxu0 0.0
    %577 = vmatmul.mubr.f32.gmra.mxu0 %v487
    %v578 = vpop.f32.mrf.mxu0
    %v579 = vadd.f32 0.0, %v578
    %v580 = vpop.f32.mrf.mxu0
    %581 = vmatprep.mubr.f32.mxu0 0.0
    %582 = vmatmul.mubr.f32.gmra.mxu0 %v488
    %v583 = vpop.f32.mrf.mxu0
    %v584 = vadd.f32 0.0, %v583
    %v585 = vpop.f32.mrf.mxu0
    %586 = vmatprep.mubr.f32.mxu0 0.0
    %587 = vmatmul.mubr.f32.gmra.mxu0 %v489
    %v588 = vpop.f32.mrf.mxu0
    %v589 = vadd.f32 0.0, %v588
    %v590 = vpop.f32.mrf.mxu0
    %591 = vdwg.mxu0
    %592 = vmatprep.subr.mxu0 0.0
    %593 = vmatpush1.msra.mxu0 %v485
    %594 = vmatprep.subr.mxu0 0.0
    %595 = vmatpush1.msra.mxu0 %v484
    %596 = vmatprep.subr.mxu0 0.0
    %597 = vmatpush1.msra.mxu0 %v483
    %598 = vmatprep.subr.mxu0 0.0
    %599 = vmatpush1.msra.mxu0 %v482
    %600 = vmatprep.subr.mxu0 0.0
    %601 = vmatpush1.msra.mxu0 %v481
    %602 = vmatprep.subr.mxu0 0.0
    %603 = vmatpush1.msra.mxu0 %v480
    %604 = vmatprep.subr.mxu0 0.0
    %605 = vmatpush1.msra.mxu0 %v479
    %606 = vmatprep.subr.mxu0 0.0
    %607 = vmatpush1.msra.mxu0 %v478
    %608 = vmatprep.subr.mxu0 0.0
    %609 = vmatpush1.msra.mxu0 %v477
    %610 = vmatprep.subr.mxu0 0.0
    %611 = vmatpush1.msra.mxu0 %v476
    %612 = vmatprep.subr.mxu0 0.0
    %613 = vmatpush1.msra.mxu0 %v475
    %614 = vmatprep.subr.mxu0 0.0
    %615 = vmatpush1.msra.mxu0 %v474
    %616 = vmatprep.subr.mxu0 0.0
    %617 = vmatpush1.msra.mxu0 %v473
    %618 = vmatprep.subr.mxu0 0.0
    %619 = vmatpush1.msra.mxu0 %v472
    %620 = vmatprep.subr.mxu0 0.0
    %621 = vmatpush1.msra.mxu0 %v471
    %622 = vmatprep.subr.mxu0 0.0
    %623 = vmatpush1.msra.mxu0 %v470
    %624 = vmatprep.subr.mxu0 0.0
    %625 = vmatpush2.msra.mxu0 0.0
    %626 = vmatprep.subr.mxu0 0.0
    %627 = vmatpush2.msra.mxu0 0.0
    %628 = vmatprep.subr.mxu0 0.0
    %629 = vmatpush2.msra.mxu0 0.0
    %630 = vmatprep.subr.mxu0 0.0
    %631 = vmatpush2.msra.mxu0 0.0
    %632 = vmatprep.subr.mxu0 0.0
    %633 = vmatpush2.msra.mxu0 0.0
    %634 = vmatprep.subr.mxu0 0.0
    %635 = vmatpush2.msra.mxu0 0.0
    %636 = vmatprep.subr.mxu0 0.0
    %637 = vmatpush2.msra.mxu0 0.0
    %638 = vmatprep.subr.mxu0 0.0
    %639 = vmatpush2.msra.mxu0 0.0
    %640 = vmatprep.subr.mxu0 0.0
    %641 = vmatpush2.msra.mxu0 0.0
    %642 = vmatprep.subr.mxu0 0.0
    %643 = vmatpush2.msra.mxu0 0.0
    %644 = vmatprep.subr.mxu0 0.0
    %645 = vmatpush2.msra.mxu0 0.0
    %646 = vmatprep.subr.mxu0 0.0
    %647 = vmatpush2.msra.mxu0 0.0
    %648 = vmatprep.subr.mxu0 0.0
    %649 = vmatpush2.msra.mxu0 0.0
    %650 = vmatprep.subr.mxu0 0.0
    %651 = vmatpush2.msra.mxu0 0.0
    %652 = vmatprep.subr.mxu0 0.0
    %653 = vmatpush2.msra.mxu0 0.0
    %654 = vmatprep.subr.mxu0 0.0
    %655 = vmatpush2.msra.mxu0 0.0
    %656 = vmatprep.mubr.f32.mxu0 0.0
    %657 = vmatmul.mubr.f32.gmra.mxu0 %v466
    %v658 = vpop.f32.mrf.mxu0
    %v659 = vadd.f32 %v574, %v658
    %v660 = vpop.f32.mrf.mxu0
    %661 = vmatprep.mubr.f32.mxu0 0.0
    %662 = vmatmul.mubr.f32.gmra.mxu0 %v467
    %v663 = vpop.f32.mrf.mxu0
    %v664 = vadd.f32 %v579, %v663
    %v665 = vpop.f32.mrf.mxu0
    %666 = vmatprep.mubr.f32.mxu0 0.0
    %667 = vmatmul.mubr.f32.gmra.mxu0 %v468
    %v668 = vpop.f32.mrf.mxu0
    %v669 = vadd.f32 %v584, %v668
    %v670 = vpop.f32.mrf.mxu0
    %671 = vmatprep.mubr.f32.mxu0 0.0
    %672 = vmatmul.mubr.f32.gmra.mxu0 %v469
    %v673 = vpop.f32.mrf.mxu0
    %v674 = vadd.f32 %v589, %v673
    %v675 = vpop.f32.mrf.mxu0
    %676 = vdwg.mxu0
    %v677 = vld [vmem:[#allocation3 + $0x2] sm:$0xff]
    %v678 = vld [vmem:[#allocation3 + $0xa] sm:$0xff]
    %v679 = vld [vmem:[#allocation3 + $0x1a] sm:$0xff]
    %v680 = vld [vmem:[#allocation3 + $0x22] sm:$0xff]
    %s681 = scalar_lea.vmem [#allocation9], 256
    %v682 = vld [vmem:[%s681] sm:$0xff]
    %v683 = vld [vmem:[%s681 + $0x8] sm:$0xff]
    %v684 = vld [vmem:[%s681 + $0x10] sm:$0xff]
    %v685 = vld [vmem:[%s681 + $0x18] sm:$0xff]
    %v686 = vld [vmem:[%s681 + $0x20] sm:$0xff]
    %v687 = vld [vmem:[%s681 + $0x28] sm:$0xff]
    %v688 = vld [vmem:[%s681 + $0x30] sm:$0xff]
    %v689 = vld [vmem:[%s681 + $0x38] sm:$0xff]
    %v690 = vld [vmem:[%s681 + $0x40] sm:$0xff]
    %v691 = vld [vmem:[%s681 + $0x48] sm:$0xff]
    %v692 = vld [vmem:[%s681 + $0x50] sm:$0xff]
    %v693 = vld [vmem:[%s681 + $0x58] sm:$0xff]
    %v694 = vld [vmem:[%s681 + $0x60] sm:$0xff]
    %v695 = vld [vmem:[%s681 + $0x68] sm:$0xff]
    %v696 = vld [vmem:[%s681 + $0x70] sm:$0xff]
    %v697 = vld [vmem:[%s681 + $0x78] sm:$0xff]
    %698 = vmatprep.subr.mxu0 0.0
    %699 = vmatpush1.msra.mxu0 %v697
    %700 = vmatprep.subr.mxu0 0.0
    %701 = vmatpush1.msra.mxu0 %v696
    %702 = vmatprep.subr.mxu0 0.0
    %703 = vmatpush1.msra.mxu0 %v695
    %704 = vmatprep.subr.mxu0 0.0
    %705 = vmatpush1.msra.mxu0 %v694
    %706 = vmatprep.subr.mxu0 0.0
    %707 = vmatpush1.msra.mxu0 %v693
    %708 = vmatprep.subr.mxu0 0.0
    %709 = vmatpush1.msra.mxu0 %v692
    %710 = vmatprep.subr.mxu0 0.0
    %711 = vmatpush1.msra.mxu0 %v691
    %712 = vmatprep.subr.mxu0 0.0
    %713 = vmatpush1.msra.mxu0 %v690
    %714 = vmatprep.subr.mxu0 0.0
    %715 = vmatpush1.msra.mxu0 %v689
    %716 = vmatprep.subr.mxu0 0.0
    %717 = vmatpush1.msra.mxu0 %v688
    %718 = vmatprep.subr.mxu0 0.0
    %719 = vmatpush1.msra.mxu0 %v687
    %720 = vmatprep.subr.mxu0 0.0
    %721 = vmatpush1.msra.mxu0 %v686
    %722 = vmatprep.subr.mxu0 0.0
    %723 = vmatpush1.msra.mxu0 %v685
    %724 = vmatprep.subr.mxu0 0.0
    %725 = vmatpush1.msra.mxu0 %v684
    %726 = vmatprep.subr.mxu0 0.0
    %727 = vmatpush1.msra.mxu0 %v683
    %728 = vmatprep.subr.mxu0 0.0
    %729 = vmatpush1.msra.mxu0 %v682
    %730 = vmatprep.subr.mxu0 0.0
    %731 = vmatpush2.msra.mxu0 0.0
    %732 = vmatprep.subr.mxu0 0.0
    %733 = vmatpush2.msra.mxu0 0.0
    %734 = vmatprep.subr.mxu0 0.0
    %735 = vmatpush2.msra.mxu0 0.0
    %736 = vmatprep.subr.mxu0 0.0
    %737 = vmatpush2.msra.mxu0 0.0
    %738 = vmatprep.subr.mxu0 0.0
    %739 = vmatpush2.msra.mxu0 0.0
    %740 = vmatprep.subr.mxu0 0.0
    %741 = vmatpush2.msra.mxu0 0.0
    %742 = vmatprep.subr.mxu0 0.0
    %743 = vmatpush2.msra.mxu0 0.0
    %744 = vmatprep.subr.mxu0 0.0
    %745 = vmatpush2.msra.mxu0 0.0
    %746 = vmatprep.subr.mxu0 0.0
    %747 = vmatpush2.msra.mxu0 0.0
    %748 = vmatprep.subr.mxu0 0.0
    %749 = vmatpush2.msra.mxu0 0.0
    %750 = vmatprep.subr.mxu0 0.0
    %751 = vmatpush2.msra.mxu0 0.0
    %752 = vmatprep.subr.mxu0 0.0
    %753 = vmatpush2.msra.mxu0 0.0
    %754 = vmatprep.subr.mxu0 0.0
    %755 = vmatpush2.msra.mxu0 0.0
    %756 = vmatprep.subr.mxu0 0.0
    %757 = vmatpush2.msra.mxu0 0.0
    %758 = vmatprep.subr.mxu0 0.0
    %759 = vmatpush2.msra.mxu0 0.0
    %760 = vmatprep.subr.mxu0 0.0
    %761 = vmatpush2.msra.mxu0 0.0
    %762 = vmatprep.mubr.f32.mxu0 0.0
    %763 = vmatmul.mubr.f32.gmra.mxu0 %v677
    %v764 = vpop.f32.mrf.mxu0
    %v765 = vadd.f32 0.0, %v764
    %v766 = vpop.f32.mrf.mxu0
    %767 = vmatprep.mubr.f32.mxu0 0.0
    %768 = vmatmul.mubr.f32.gmra.mxu0 %v678
    %v769 = vpop.f32.mrf.mxu0
    %v770 = vadd.f32 0.0, %v769
    %v771 = vpop.f32.mrf.mxu0
    %772 = vmatprep.mubr.f32.mxu0 0.0
    %773 = vmatmul.mubr.f32.gmra.mxu0 %v679
    %v774 = vpop.f32.mrf.mxu0
    %v775 = vadd.f32 0.0, %v774
    %v776 = vpop.f32.mrf.mxu0
    %777 = vmatprep.mubr.f32.mxu0 0.0
    %778 = vmatmul.mubr.f32.gmra.mxu0 %v680
    %v779 = vpop.f32.mrf.mxu0
    %v780 = vadd.f32 0.0, %v779
    %v781 = vpop.f32.mrf.mxu0
    %782 = vdwg.mxu0
    %v783 = vadd.f32 %v659, %v765
    %v784 = vadd.f32 %v664, %v770
    %v785 = vadd.f32 %v669, %v775
    %v786 = vadd.f32 %v674, %v780
    %v787 = vld [vmem:[%s5] sm:$0x1]
    %v789 = vlaneseq
    %v790 = vshrl.u32 %v789, 7
    %v791 = vsub.s32 0, %v790
    %v792 = vrot.slane %v787, %v791
    %v794 = vmul.f32 %v783, %v792
    %v795 = vmul.f32 %v784, %v792
    %v796 = vmul.f32 %v785, %v792
    %v797 = vmul.f32 %v786, %v792
    %v798 = vld [vmem:[%s6] sm:$0x1]
    %v800 = vlaneseq
    %v801 = vshrl.u32 %v800, 7
    %v802 = vsub.s32 0, %v801
    %v803 = vrot.slane %v798, %v802
    %v805 = vadd.f32 %v794, %v803
    %v806 = vadd.f32 %v795, %v803
    %v807 = vadd.f32 %v796, %v803
    %v808 = vadd.f32 %v797, %v803
    %v809 = vmax.f32 %v805, 0.0
    %v810 = vmax.f32 %v806, 0.0
    %v811 = vmax.f32 %v807, 0.0
    %v812 = vmax.f32 %v808, 0.0
    %v813 = vld [vmem:[#allocation4] sm:$0xff]
    %v814 = vld [vmem:[#allocation4 + $0x8] sm:$0xff]
    %v815 = vld [vmem:[#allocation4 + $0x10] sm:$0xff]
    %v816 = vld [vmem:[#allocation4 + $0x18] sm:$0xff]
    %v817 = vld [vmem:[#allocation10] sm:$0xff]
    %v818 = vld [vmem:[#allocation10 + $0x8] sm:$0xff]
    %v819 = vld [vmem:[#allocation10 + $0x10] sm:$0xff]
    %v820 = vld [vmem:[#allocation10 + $0x18] sm:$0xff]
    %v821 = vld [vmem:[#allocation10 + $0x20] sm:$0xff]
    %v822 = vld [vmem:[#allocation10 + $0x28] sm:$0xff]
    %v823 = vld [vmem:[#allocation10 + $0x30] sm:$0xff]
    %v824 = vld [vmem:[#allocation10 + $0x38] sm:$0xff]
    %v826 = vsel %vm94, %v813, 0
    %v829 = vsel %vm94, %v814, 0
    %v832 = vsel %vm94, %v815, 0
    %v835 = vsel %vm94, %v816, 0
    %837 = vmatprep.subr.mxu0 0.0
    %838 = vmatpush1.msra.mxu0 0.0
    %839 = vmatprep.subr.mxu0 0.0
    %840 = vmatpush1.msra.mxu0 0.0
    %841 = vmatprep.subr.mxu0 0.0
    %842 = vmatpush1.msra.mxu0 0.0
    %843 = vmatprep.subr.mxu0 0.0
    %844 = vmatpush1.msra.mxu0 0.0
    %845 = vmatprep.subr.mxu0 0.0
    %846 = vmatpush1.msra.mxu0 0.0
    %847 = vmatprep.subr.mxu0 0.0
    %848 = vmatpush1.msra.mxu0 0.0
    %849 = vmatprep.subr.mxu0 0.0
    %850 = vmatpush1.msra.mxu0 0.0
    %851 = vmatprep.subr.mxu0 0.0
    %852 = vmatpush1.msra.mxu0 0.0
    %853 = vmatprep.subr.mxu0 0.0
    %854 = vmatpush1.msra.mxu0 %v824
    %855 = vmatprep.subr.mxu0 0.0
    %856 = vmatpush1.msra.mxu0 %v823
    %857 = vmatprep.subr.mxu0 0.0
    %858 = vmatpush1.msra.mxu0 %v822
    %859 = vmatprep.subr.mxu0 0.0
    %860 = vmatpush1.msra.mxu0 %v821
    %861 = vmatprep.subr.mxu0 0.0
    %862 = vmatpush1.msra.mxu0 %v820
    %863 = vmatprep.subr.mxu0 0.0
    %864 = vmatpush1.msra.mxu0 %v819
    %865 = vmatprep.subr.mxu0 0.0
    %866 = vmatpush1.msra.mxu0 %v818
    %867 = vmatprep.subr.mxu0 0.0
    %868 = vmatpush1.msra.mxu0 %v817
    %869 = vmatprep.subr.mxu0 0.0
    %870 = vmatpush2.msra.mxu0 0.0
    %871 = vmatprep.subr.mxu0 0.0
    %872 = vmatpush2.msra.mxu0 0.0
    %873 = vmatprep.subr.mxu0 0.0
    %874 = vmatpush2.msra.mxu0 0.0
    %875 = vmatprep.subr.mxu0 0.0
    %876 = vmatpush2.msra.mxu0 0.0
    %877 = vmatprep.subr.mxu0 0.0
    %878 = vmatpush2.msra.mxu0 0.0
    %879 = vmatprep.subr.mxu0 0.0
    %880 = vmatpush2.msra.mxu0 0.0
    %881 = vmatprep.subr.mxu0 0.0
    %882 = vmatpush2.msra.mxu0 0.0
    %883 = vmatprep.subr.mxu0 0.0
    %884 = vmatpush2.msra.mxu0 0.0
    %885 = vmatprep.subr.mxu0 0.0
    %886 = vmatpush2.msra.mxu0 0.0
    %887 = vmatprep.subr.mxu0 0.0
    %888 = vmatpush2.msra.mxu0 0.0
    %889 = vmatprep.subr.mxu0 0.0
    %890 = vmatpush2.msra.mxu0 0.0
    %891 = vmatprep.subr.mxu0 0.0
    %892 = vmatpush2.msra.mxu0 0.0
    %893 = vmatprep.subr.mxu0 0.0
    %894 = vmatpush2.msra.mxu0 0.0
    %895 = vmatprep.subr.mxu0 0.0
    %896 = vmatpush2.msra.mxu0 0.0
    %897 = vmatprep.subr.mxu0 0.0
    %898 = vmatpush2.msra.mxu0 0.0
    %899 = vmatprep.subr.mxu0 0.0
    %900 = vmatpush2.msra.mxu0 0.0
    %901 = vmatprep.mubr.f32.mxu0 0.0
    %902 = vmatmul.mubr.f32.gmra.mxu0 %v826
    %v903 = vpop.f32.mrf.mxu0
    %v904 = vadd.f32 0.0, %v903
    %v905 = vpop.f32.mrf.mxu0
    %906 = vmatprep.mubr.f32.mxu0 0.0
    %907 = vmatmul.mubr.f32.gmra.mxu0 %v829
    %v908 = vpop.f32.mrf.mxu0
    %v909 = vadd.f32 0.0, %v908
    %v910 = vpop.f32.mrf.mxu0
    %911 = vmatprep.mubr.f32.mxu0 0.0
    %912 = vmatmul.mubr.f32.gmra.mxu0 %v832
    %v913 = vpop.f32.mrf.mxu0
    %v914 = vadd.f32 0.0, %v913
    %v915 = vpop.f32.mrf.mxu0
    %916 = vmatprep.mubr.f32.mxu0 0.0
    %917 = vmatmul.mubr.f32.gmra.mxu0 %v835
    %v918 = vpop.f32.mrf.mxu0
    %v919 = vadd.f32 0.0, %v918
    %v920 = vpop.f32.mrf.mxu0
    %921 = vdwg.mxu0
    %v922 = vadd.f32 %v809, %v904
    %v923 = vadd.f32 %v810, %v909
    %v924 = vadd.f32 %v811, %v914
    %v925 = vadd.f32 %v812, %v919
    %926 = vst [vmem:[#allocation12] sm:$0xff] %v922
    %927 = vst [vmem:[#allocation12 + $0x8] sm:$0xff] %v923
    %928 = vst [vmem:[#allocation12 + $0x10] sm:$0xff] %v924
    %929 = vst [vmem:[#allocation12 + $0x18] sm:$0xff] %v925
    // Predicated region
    $region50: #{tpu_custom_call.1} parent=1 // pred_check
      _
    $region51: #{tpu_custom_call.1} parent=1 // pred_check_branch
      %931 = sbr.rel (0) target = $region53
    $region52: #{tpu_custom_call.1} parent=1 // pred_region
      %s933 = ssub.s32 512, 512
      %934 = vsyncadd [#allocation6], %s933
      %s935 = sshll.u32 [#allocation12], 4
      %s936 = int_to_ptr.vmem [resolvable:$true] %s935
      %941 = dma.vmem_to_hbm [thread:$0]  %s936, 512, %s8, [#allocation6], 128, 128, 8
    $region53: #{tpu_custom_call.1} parent=1 // pred_fallthru
      _
    // Predicated region
    $region54: #{tpu_custom_call.1} parent=1 // pred_check
      _
    $region55: #{tpu_custom_call.1} parent=1 // pred_check_branch
      %943 = sbr.rel (0) target = $region57
    $region56: #{tpu_custom_call.1} parent=1 // pred_region
      %944 = dma.done [#allocation6], 512
    $region57: #{tpu_custom_call.1} parent=1 // pred_fallthru
      _
    %945 = vsyncpa [#allocation5], 1
    %946 = vsyncpa [#allocation8], 1
    %947 = vsyncpa [#allocation11], 1
    %948 = vsyncpa [#allocation6], 1

</llo_original>
